<compile_context>
chip_gen: v6e
topology: v6e:2x2x1
jax: 0.10.0
libtpu: 0.0.40
codegen_flags: <defaults>
</compile_context>

<pallas_src>
import jax
import jax.numpy as jnp
from jax.experimental import pallas as pl
from jax.experimental.pallas import tpu as pltpu

D_MODEL = 32           # small synthetic d_model (module default is 2048)
MEMORY_DEPTH = 2
DECODER_LAYERS = 2
T_OUT = 2
FINAL_OUT = T_OUT * 2  # 4
OUT_PAD = 128          # lane-dense padded width of the final output

_LIN_PER_LAYER = MEMORY_DEPTH + 2                      # 2 mem + 2 core linears
_N_LIN = DECODER_LAYERS * _LIN_PER_LAYER               # linears before composition
N_STACK = DECODER_LAYERS * (_LIN_PER_LAYER - 1)        # ReLU'd linears after composition


def _vmem_spec():
    # whole-array block resident in VMEM (every operand here is tiny)
    return pl.BlockSpec(memory_space=pltpu.MemorySpace.VMEM)


# ---------------------------------------------------------------------------
# Fused kernel: pre-composed layer stack + mean-over-T + final linear.
#   x_ref  : (N=B*T, D)        flat tokens, D on the lane axis
#   w_ref  : (N_STACK*D, D)    sublane-stacked ReLU'd weights
#   b_ref  : (N_STACK, D)      matching biases (one row each)
#   wf_ref : (D, OUT_PAD)      final linear, core-last folded in, lane-padded
#   bf_ref : (1, OUT_PAD)
#   o_ref  : (8k, OUT_PAD)     sublane/lane-dense output slab
# ---------------------------------------------------------------------------
def titans_fused_kernel(x_ref, w_ref, b_ref, wf_ref, bf_ref, o_ref):
    n_tok, d = x_ref.shape
    pad_b = o_ref.shape[0]
    n_stack = w_ref.shape[0] // d

    h = x_ref[...]                                           # (N, D) f32
    for li in range(n_stack):                                # 6 fused Linear+ReLU
        w = w_ref[pl.ds(li * d, d), :]                       # static, tile-aligned view
        b = b_ref[pl.ds(li, 1), :]                           # (1, D), broadcasts on sublanes
        h = jnp.maximum(jnp.dot(h, w, preferred_element_type=jnp.float32) + b, 0.0)

    # mean over T built in-kernel: pool[b, n] = 1/T if n belongs to batch b
    rows = jax.lax.broadcasted_iota(jnp.int32, (pad_b, n_tok), 0)
    cols = jax.lax.broadcasted_iota(jnp.int32, (pad_b, n_tok), 1)
    in_batch = (cols >= rows * T_OUT) & (cols < (rows + 1) * T_OUT)
    pool = jnp.where(in_batch, 1.0 / T_OUT, 0.0)             # (pad_b, N)

    avg = jnp.dot(pool, h, preferred_element_type=jnp.float32)          # (pad_b, D)
    y = jnp.dot(avg, wf_ref[...], preferred_element_type=jnp.float32) + bf_ref[...]
    o_ref[...] = y.astype(o_ref.dtype)                        # single unmasked vreg store


# ---------------------------------------------------------------------------
# Parameter construction (deterministic, PyTorch-Linear-like uniform init).
# Weights stored as (in, out) so the kernel computes x @ W + b.
# ---------------------------------------------------------------------------
def init_params(key, d_model=D_MODEL):
    def linear(k, fan_in, fan_out):
        kw, kb = jax.random.split(k)
        bound = 1.0 / jnp.sqrt(fan_in)
        w = jax.random.uniform(kw, (fan_in, fan_out), jnp.float32, -bound, bound)
        b = jax.random.uniform(kb, (1, fan_out), jnp.float32, -bound, bound)
        return w, b

    params = {"layers": [], "final": None}
    keys = jax.random.split(key, _N_LIN + 1)
    ki = 0
    for _ in range(DECODER_LAYERS):
        layer = []
        for _ in range(_LIN_PER_LAYER):
            layer.append(linear(keys[ki], d_model, d_model))
            ki += 1
        params["layers"].append(layer)
    params["final"] = linear(keys[ki], d_model, FINAL_OUT)
    return params


# ---------------------------------------------------------------------------
# One-time packing: pre-compose ReLU-free linear pairs, stack weights/biases,
# zero-pad the final linear to a lane-dense OUT_PAD width.  Done ONCE outside
# the jitted forward (hoists all constant construction off the call path).
# ---------------------------------------------------------------------------
def pack_params(params, d_model=D_MODEL):
    lins = []
    for layer in params["layers"]:
        lins.extend(layer)                                   # application order
    wf, bf = params["final"]
    wf_pad = jnp.zeros((d_model, OUT_PAD), jnp.float32).at[:, :FINAL_OUT].set(wf)
    bf_pad = jnp.zeros((1, OUT_PAD), jnp.float32).at[:, :FINAL_OUT].set(bf)

    composed = []   # list of (w, b), each followed by a ReLU in the kernel
    i, n = 0, len(lins)
    while i < n:
        w, b = lins[i]
        is_layer_last = (i % _LIN_PER_LAYER) == (_LIN_PER_LAYER - 1)  # no ReLU after
        if not is_layer_last:
            composed.append((w, b))
            i += 1
        elif i + 1 < n:
            # compose core-last of layer j with mem-first of layer j+1
            w2, b2 = lins[i + 1]
            composed.append((w @ w2, b @ w2 + b2))
            i += 2
        else:
            # fold the last layer's core-last into the (padded) final linear;
            # the mean-over-T pool commutes with it, so the kernel pools first.
            wf_pad, bf_pad = w @ wf_pad, b @ wf_pad + bf_pad
            i += 1
    assert len(composed) == N_STACK

    w_stack = jnp.concatenate([w for (w, _) in composed], axis=0)       # (N_STACK*D, D)
    b_stack = jnp.concatenate([b for (_, b) in composed], axis=0)       # (N_STACK, D)
    return {"w_stack": w_stack, "b_stack": b_stack, "wf": wf_pad, "bf": bf_pad}


# ---------------------------------------------------------------------------
# Full forward pass: shape glue in JAX, everything else in ONE Pallas kernel.
# ---------------------------------------------------------------------------
@jax.jit
def titans_decoder_forward(x, packed):
    if x.ndim == 2:
        x = x[:, None, :]
    B, T, D = x.shape
    # pad (repeat last step) / truncate the time axis to T_OUT
    if T < T_OUT:
        x = jnp.concatenate([x, jnp.repeat(x[:, -1:, :], T_OUT - T, axis=1)], axis=1)
    elif T > T_OUT:
        x = x[:, :T_OUT, :]
    B, T, D = x.shape
    N = B * T

    x_flat = x.reshape(N, D).astype(jnp.float32)
    pad_b = ((B + 7) // 8) * 8                               # sublane-dense output rows

    y_pad = pl.pallas_call(
        titans_fused_kernel,
        out_shape=jax.ShapeDtypeStruct((pad_b, OUT_PAD), jnp.float32),
        in_specs=[_vmem_spec()] * 5,
        out_specs=_vmem_spec(),
    )(x_flat, packed["w_stack"], packed["b_stack"], packed["wf"], packed["bf"])

    return y_pad[:B, :FINAL_OUT].reshape(B, T_OUT, 2)


# ---------------------------------------------------------------------------
# Pure-JAX reference (uses the ORIGINAL, uncomposed params) for sanity checks.
# ---------------------------------------------------------------------------
def reference_forward(x, params):
    if x.ndim == 2:
        x = x[:, None, :]
    B, T, D = x.shape
    if T < T_OUT:
        x = jnp.concatenate([x, jnp.repeat(x[:, -1:, :], T_OUT - T, axis=1)], axis=1)
    elif T > T_OUT:
        x = x[:, :T_OUT, :]
    out = x.astype(jnp.float32)
    for layer in params["layers"]:
        h = out
        for i, (w, b) in enumerate(layer):
            h = h @ w + b
            if i < len(layer) - 1:
                h = jnp.maximum(h, 0.0)
        out = h
    avg = out.mean(axis=1)
    wf, bf = params["final"]
    return (avg @ wf + bf).reshape(out.shape[0], T_OUT, 2)


if __name__ == "__main__":
    key = jax.random.PRNGKey(0)
    k_param, k_x = jax.random.split(key)

    params = init_params(k_param)
    packed = pack_params(params)     # one-time weight composition / stacking

    # input: [B=2, T=8, D=32]  (module truncates T > T_out down to T_out=2)
    x = jax.random.normal(k_x, (2, 8, D_MODEL), dtype=jnp.float32)

    y = titans_decoder_forward(x, packed)
    y = jax.block_until_ready(y)

    y_ref = reference_forward(x, params)
    assert y.shape == (2, T_OUT, 2), y.shape
    assert jnp.allclose(y, y_ref, atol=1e-4, rtol=1e-4), "mismatch vs reference"

    print("KERNEL_OK")
</pallas_src>

<mosaic_0001>
module attributes {stable_mosaic.version = 11 : i64} {
  func.func @titans_fused_kernel(%arg0: memref<4x32xf32, #tpu.memory_space<vmem>>, %arg1: memref<192x32xf32, #tpu.memory_space<vmem>>, %arg2: memref<6x32xf32, #tpu.memory_space<vmem>>, %arg3: memref<32x128xf32, #tpu.memory_space<vmem>>, %arg4: memref<1x128xf32, #tpu.memory_space<vmem>>, %arg5: memref<8x128xf32, #tpu.memory_space<vmem>>) attributes {dimension_semantics = [], scalar_prefetch = 0 : i64, scratch_operands = 0 : i64, tpu.core_type = #tpu.core_type<tc>} {
    %c0 = arith.constant 0 : index
    %c0_0 = arith.constant 0 : index
    %0 = vector.load %arg0[%c0, %c0_0] : memref<4x32xf32, #tpu.memory_space<vmem>>, vector<4x32xf32>
    %c0_1 = arith.constant 0 : index
    %c0_2 = arith.constant 0 : index
    %1 = vector.load %arg1[%c0_1, %c0_2] : memref<192x32xf32, #tpu.memory_space<vmem>>, vector<32x32xf32>
    %c0_3 = arith.constant 0 : index
    %c0_4 = arith.constant 0 : index
    %2 = vector.load %arg2[%c0_3, %c0_4] : memref<6x32xf32, #tpu.memory_space<vmem>>, vector<1x32xf32>
    %cst = arith.constant dense<0.000000e+00> : vector<4x32xf32>
    %3 = tpu.matmul %0, %1, %cst {dimension_numbers = #tpu.dot_dimension_numbers<[1], [0], [0], [1], [0, 0, 1, 1], [], []>} : vector<4x32xf32>, vector<32x32xf32>, vector<4x32xf32> -> vector<4x32xf32>
    %4 = vector.broadcast %2 : vector<1x32xf32> to vector<4x32xf32>
    %5 = arith.addf %3, %4 : vector<4x32xf32>
    %cst_5 = arith.constant 0.000000e+00 : f32
    %6 = vector.broadcast %cst_5 : f32 to vector<4x32xf32>
    %7 = arith.maximumf %5, %6 : vector<4x32xf32>
    %c32 = arith.constant 32 : index
    %c0_6 = arith.constant 0 : index
    %8 = vector.load %arg1[%c32, %c0_6] : memref<192x32xf32, #tpu.memory_space<vmem>>, vector<32x32xf32>
    %c1 = arith.constant 1 : index
    %c0_7 = arith.constant 0 : index
    %9 = vector.load %arg2[%c1, %c0_7] : memref<6x32xf32, #tpu.memory_space<vmem>>, vector<1x32xf32>
    %cst_8 = arith.constant dense<0.000000e+00> : vector<4x32xf32>
    %10 = tpu.matmul %7, %8, %cst_8 {dimension_numbers = #tpu.dot_dimension_numbers<[1], [0], [0], [1], [0, 0, 1, 1], [], []>} : vector<4x32xf32>, vector<32x32xf32>, vector<4x32xf32> -> vector<4x32xf32>
    %11 = vector.broadcast %9 : vector<1x32xf32> to vector<4x32xf32>
    %12 = arith.addf %10, %11 : vector<4x32xf32>
    %cst_9 = arith.constant 0.000000e+00 : f32
    %13 = vector.broadcast %cst_9 : f32 to vector<4x32xf32>
    %14 = arith.maximumf %12, %13 : vector<4x32xf32>
    %c64 = arith.constant 64 : index
    %c0_10 = arith.constant 0 : index
    %15 = vector.load %arg1[%c64, %c0_10] : memref<192x32xf32, #tpu.memory_space<vmem>>, vector<32x32xf32>
    %c2 = arith.constant 2 : index
    %c0_11 = arith.constant 0 : index
    %16 = vector.load %arg2[%c2, %c0_11] : memref<6x32xf32, #tpu.memory_space<vmem>>, vector<1x32xf32>
    %cst_12 = arith.constant dense<0.000000e+00> : vector<4x32xf32>
    %17 = tpu.matmul %14, %15, %cst_12 {dimension_numbers = #tpu.dot_dimension_numbers<[1], [0], [0], [1], [0, 0, 1, 1], [], []>} : vector<4x32xf32>, vector<32x32xf32>, vector<4x32xf32> -> vector<4x32xf32>
    %18 = vector.broadcast %16 : vector<1x32xf32> to vector<4x32xf32>
    %19 = arith.addf %17, %18 : vector<4x32xf32>
    %cst_13 = arith.constant 0.000000e+00 : f32
    %20 = vector.broadcast %cst_13 : f32 to vector<4x32xf32>
    %21 = arith.maximumf %19, %20 : vector<4x32xf32>
    %c96 = arith.constant 96 : index
    %c0_14 = arith.constant 0 : index
    %22 = vector.load %arg1[%c96, %c0_14] : memref<192x32xf32, #tpu.memory_space<vmem>>, vector<32x32xf32>
    %c3 = arith.constant 3 : index
    %c0_15 = arith.constant 0 : index
    %23 = vector.load %arg2[%c3, %c0_15] : memref<6x32xf32, #tpu.memory_space<vmem>>, vector<1x32xf32>
    %cst_16 = arith.constant dense<0.000000e+00> : vector<4x32xf32>
    %24 = tpu.matmul %21, %22, %cst_16 {dimension_numbers = #tpu.dot_dimension_numbers<[1], [0], [0], [1], [0, 0, 1, 1], [], []>} : vector<4x32xf32>, vector<32x32xf32>, vector<4x32xf32> -> vector<4x32xf32>
    %25 = vector.broadcast %23 : vector<1x32xf32> to vector<4x32xf32>
    %26 = arith.addf %24, %25 : vector<4x32xf32>
    %cst_17 = arith.constant 0.000000e+00 : f32
    %27 = vector.broadcast %cst_17 : f32 to vector<4x32xf32>
    %28 = arith.maximumf %26, %27 : vector<4x32xf32>
    %c128 = arith.constant 128 : index
    %c0_18 = arith.constant 0 : index
    %29 = vector.load %arg1[%c128, %c0_18] : memref<192x32xf32, #tpu.memory_space<vmem>>, vector<32x32xf32>
    %c4 = arith.constant 4 : index
    %c0_19 = arith.constant 0 : index
    %30 = vector.load %arg2[%c4, %c0_19] : memref<6x32xf32, #tpu.memory_space<vmem>>, vector<1x32xf32>
    %cst_20 = arith.constant dense<0.000000e+00> : vector<4x32xf32>
    %31 = tpu.matmul %28, %29, %cst_20 {dimension_numbers = #tpu.dot_dimension_numbers<[1], [0], [0], [1], [0, 0, 1, 1], [], []>} : vector<4x32xf32>, vector<32x32xf32>, vector<4x32xf32> -> vector<4x32xf32>
    %32 = vector.broadcast %30 : vector<1x32xf32> to vector<4x32xf32>
    %33 = arith.addf %31, %32 : vector<4x32xf32>
    %cst_21 = arith.constant 0.000000e+00 : f32
    %34 = vector.broadcast %cst_21 : f32 to vector<4x32xf32>
    %35 = arith.maximumf %33, %34 : vector<4x32xf32>
    %c160 = arith.constant 160 : index
    %c0_22 = arith.constant 0 : index
    %36 = vector.load %arg1[%c160, %c0_22] : memref<192x32xf32, #tpu.memory_space<vmem>>, vector<32x32xf32>
    %c5 = arith.constant 5 : index
    %c0_23 = arith.constant 0 : index
    %37 = vector.load %arg2[%c5, %c0_23] : memref<6x32xf32, #tpu.memory_space<vmem>>, vector<1x32xf32>
    %cst_24 = arith.constant dense<0.000000e+00> : vector<4x32xf32>
    %38 = tpu.matmul %35, %36, %cst_24 {dimension_numbers = #tpu.dot_dimension_numbers<[1], [0], [0], [1], [0, 0, 1, 1], [], []>} : vector<4x32xf32>, vector<32x32xf32>, vector<4x32xf32> -> vector<4x32xf32>
    %39 = vector.broadcast %37 : vector<1x32xf32> to vector<4x32xf32>
    %40 = arith.addf %38, %39 : vector<4x32xf32>
    %cst_25 = arith.constant 0.000000e+00 : f32
    %41 = vector.broadcast %cst_25 : f32 to vector<4x32xf32>
    %42 = arith.maximumf %40, %41 : vector<4x32xf32>
    %43 = tpu.iota {dimensions = array<i32: 0>} : vector<8x4xi32>
    %44 = tpu.iota {dimensions = array<i32: 1>} : vector<8x4xi32>
    %c2_i32 = arith.constant 2 : i32
    %45 = vector.broadcast %c2_i32 : i32 to vector<8x4xi32>
    %46 = arith.muli %43, %45 : vector<8x4xi32>
    %47 = arith.cmpi sge, %44, %46 : vector<8x4xi32>
    %c1_i32 = arith.constant 1 : i32
    %48 = vector.broadcast %c1_i32 : i32 to vector<8x4xi32>
    %49 = arith.addi %43, %48 : vector<8x4xi32>
    %c2_i32_26 = arith.constant 2 : i32
    %50 = vector.broadcast %c2_i32_26 : i32 to vector<8x4xi32>
    %51 = arith.muli %49, %50 : vector<8x4xi32>
    %52 = arith.cmpi slt, %44, %51 : vector<8x4xi32>
    %53 = arith.andi %47, %52 : vector<8x4xi1>
    %cst_27 = arith.constant 5.000000e-01 : f32
    %cst_28 = arith.constant 0.000000e+00 : f32
    %54 = vector.broadcast %cst_27 : f32 to vector<8x4xf32>
    %55 = vector.broadcast %cst_28 : f32 to vector<8x4xf32>
    %56 = arith.select %53, %54, %55 : vector<8x4xi1>, vector<8x4xf32>
    %cst_29 = arith.constant dense<0.000000e+00> : vector<8x32xf32>
    %57 = tpu.matmul %56, %42, %cst_29 {dimension_numbers = #tpu.dot_dimension_numbers<[1], [0], [0], [1], [0, 0, 1, 1], [], []>} : vector<8x4xf32>, vector<4x32xf32>, vector<8x32xf32> -> vector<8x32xf32>
    %c0_30 = arith.constant 0 : index
    %c0_31 = arith.constant 0 : index
    %58 = vector.load %arg3[%c0_30, %c0_31] : memref<32x128xf32, #tpu.memory_space<vmem>>, vector<32x128xf32>
    %cst_32 = arith.constant dense<0.000000e+00> : vector<8x128xf32>
    %59 = tpu.matmul %57, %58, %cst_32 {dimension_numbers = #tpu.dot_dimension_numbers<[1], [0], [0], [1], [0, 0, 1, 1], [], []>} : vector<8x32xf32>, vector<32x128xf32>, vector<8x128xf32> -> vector<8x128xf32>
    %c0_33 = arith.constant 0 : index
    %c0_34 = arith.constant 0 : index
    %60 = vector.load %arg4[%c0_33, %c0_34] : memref<1x128xf32, #tpu.memory_space<vmem>>, vector<1x128xf32>
    %61 = vector.broadcast %60 : vector<1x128xf32> to vector<8x128xf32>
    %62 = arith.addf %59, %61 : vector<8x128xf32>
    %c0_35 = arith.constant 0 : index
    %c0_36 = arith.constant 0 : index
    %63 = vector.load %arg5[%c0_35, %c0_36] : memref<8x128xf32, #tpu.memory_space<vmem>>, vector<8x128xf32>
    tpu.vector_store %arg5[%c0_35, %c0_36], %62 {strides = array<i32>} : memref<8x128xf32, #tpu.memory_space<vmem>>, vector<8x128xf32>,
    return
  }
}

</mosaic_0001>

<llo_original>
// kernel: titans_decoder_forward.1
$region0: #{titans_decoder_forward.1}
  #allocation0 [shape = 'u32[]', space=smem, size = 0x4, offset = 0x4, fixed_abs, tag = 'smem constant byte address 0x4 - core index']
  #allocation1 [shape = 'u32[144,128]{1,0:T(1,128)}', space=vmem, size = 0x12000, scoped, tag = 'internal scratch']
  %s0 = inlined_call_operand.vmem [shape: f32[4,32], index: 0, kind: input, shape index: {}]
  %s1 = inlined_call_operand.vmem [shape: f32[192,32], index: 1, kind: input, shape index: {}]
  %s2 = inlined_call_operand.vmem [shape: f32[6,32], index: 2, kind: input, shape index: {}]
  %s3 = inlined_call_operand.vmem [shape: f32[32,128], index: 3, kind: input, shape index: {}]
  %s4 = inlined_call_operand.vmem [shape: f32[1,128], index: 4, kind: input, shape index: {}]
  %s5 = inlined_call_operand.vmem [shape: f32[8,128], index: 5, kind: output, shape index: {}]
  %s6 = sld [smem:[#allocation0]]
  $region30: #{titans_decoder_forward.1} parent=0
    _
  %s8 = ssub.s32 1, %s6
  %s9 = scalar_select 0, %s8, %s6
  // Predicated region
  $region2: #{titans_decoder_forward.1} parent=0 // pred_check
    _
  $region3: #{titans_decoder_forward.1} parent=0 // pred_check_branch
    %11 = sbr.rel (0) target = $region5
  $region4: #{titans_decoder_forward.1} parent=0 // pred_region
    _
  $region5: #{titans_decoder_forward.1} parent=0 // pred_fallthru
    _
  // Predicated region
  $region6: #{titans_decoder_forward.1} parent=0 // pred_check
    _
  $region7: #{titans_decoder_forward.1} parent=0 // pred_check_branch
    %13 = sbr.rel (0) target = $region9
  $region8: #{titans_decoder_forward.1} parent=0 // pred_region
    _
  $region9: #{titans_decoder_forward.1} parent=0 // pred_fallthru
    _
  // Predicated region
  $region10: #{titans_decoder_forward.1} parent=0 // pred_check
    _
  $region11: #{titans_decoder_forward.1} parent=0 // pred_check_branch
    %15 = sbr.rel (0) target = $region13
  $region12: #{titans_decoder_forward.1} parent=0 // pred_region
    _
  $region13: #{titans_decoder_forward.1} parent=0 // pred_fallthru
    _
  // Predicated region
  $region14: #{titans_decoder_forward.1} parent=0 // pred_check
    _
  $region15: #{titans_decoder_forward.1} parent=0 // pred_check_branch
    %17 = sbr.rel (0) target = $region17
  $region16: #{titans_decoder_forward.1} parent=0 // pred_region
    _
  $region17: #{titans_decoder_forward.1} parent=0 // pred_fallthru
    _
  // Predicated region
  $region18: #{titans_decoder_forward.1} parent=0 // pred_check
    _
  $region19: #{titans_decoder_forward.1} parent=0 // pred_check_branch
    %19 = sbr.rel (0) target = $region21
  $region20: #{titans_decoder_forward.1} parent=0 // pred_region
    _
  $region21: #{titans_decoder_forward.1} parent=0 // pred_fallthru
    _
  %v20 = vld [vmem:[%s0] sm:$0xf]
  %v21 = vld [vmem:[%s1] sm:$0xff]
  %v22 = vld [vmem:[%s1 + $0x8] sm:$0xff]
  %v23 = vld [vmem:[%s1 + $0x10] sm:$0xff]
  %v24 = vld [vmem:[%s1 + $0x18] sm:$0xff]
  %v25 = vld [vmem:[%s2] sm:$0x1]
  %v26 = vlaneseq
  %v27 = vshrl.u32 %v26, 7
  %v28 = vsub.s32 0, %v27
  %v29 = vrot.slane %v25, %v28
  %vm30 = vcmask 261120
  %v32 = vsel %vm30, %v20, 0
  %34 = vmatprep.subr.mxu0 0.0
  %35 = vmatpush1.msra.mxu0 0.0
  %36 = vmatprep.subr.mxu0 0.0
  %37 = vmatpush1.msra.mxu0 0.0
  %38 = vmatprep.subr.mxu0 0.0
  %39 = vmatpush1.msra.mxu0 0.0
  %40 = vmatprep.subr.mxu0 0.0
  %41 = vmatpush1.msra.mxu0 0.0
  %42 = vmatprep.subr.mxu0 0.0
  %43 = vmatpush1.msra.mxu0 0.0
  %44 = vmatprep.subr.mxu0 0.0
  %45 = vmatpush1.msra.mxu0 0.0
  %46 = vmatprep.subr.mxu0 0.0
  %47 = vmatpush1.msra.mxu0 0.0
  %48 = vmatprep.subr.mxu0 0.0
  %49 = vmatpush1.msra.mxu0 0.0
  %50 = vmatprep.subr.mxu0 0.0
  %51 = vmatpush1.msra.mxu0 0.0
  %52 = vmatprep.subr.mxu0 0.0
  %53 = vmatpush1.msra.mxu0 0.0
  %54 = vmatprep.subr.mxu0 0.0
  %55 = vmatpush1.msra.mxu0 0.0
  %56 = vmatprep.subr.mxu0 0.0
  %57 = vmatpush1.msra.mxu0 0.0
  %58 = vmatprep.subr.mxu0 0.0
  %59 = vmatpush1.msra.mxu0 %v24
  %60 = vmatprep.subr.mxu0 0.0
  %61 = vmatpush1.msra.mxu0 %v23
  %62 = vmatprep.subr.mxu0 0.0
  %63 = vmatpush1.msra.mxu0 %v22
  %64 = vmatprep.subr.mxu0 0.0
  %65 = vmatpush1.msra.mxu0 %v21
  %66 = vmatprep.subr.mxu0 0.0
  %67 = vmatpush2.msra.mxu0 0.0
  %68 = vmatprep.subr.mxu0 0.0
  %69 = vmatpush2.msra.mxu0 0.0
  %70 = vmatprep.subr.mxu0 0.0
  %71 = vmatpush2.msra.mxu0 0.0
  %72 = vmatprep.subr.mxu0 0.0
  %73 = vmatpush2.msra.mxu0 0.0
  %74 = vmatprep.subr.mxu0 0.0
  %75 = vmatpush2.msra.mxu0 0.0
  %76 = vmatprep.subr.mxu0 0.0
  %77 = vmatpush2.msra.mxu0 0.0
  %78 = vmatprep.subr.mxu0 0.0
  %79 = vmatpush2.msra.mxu0 0.0
  %80 = vmatprep.subr.mxu0 0.0
  %81 = vmatpush2.msra.mxu0 0.0
  %82 = vmatprep.subr.mxu0 0.0
  %83 = vmatpush2.msra.mxu0 0.0
  %84 = vmatprep.subr.mxu0 0.0
  %85 = vmatpush2.msra.mxu0 0.0
  %86 = vmatprep.subr.mxu0 0.0
  %87 = vmatpush2.msra.mxu0 0.0
  %88 = vmatprep.subr.mxu0 0.0
  %89 = vmatpush2.msra.mxu0 0.0
  %90 = vmatprep.subr.mxu0 0.0
  %91 = vmatpush2.msra.mxu0 0.0
  %92 = vmatprep.subr.mxu0 0.0
  %93 = vmatpush2.msra.mxu0 0.0
  %94 = vmatprep.subr.mxu0 0.0
  %95 = vmatpush2.msra.mxu0 0.0
  %96 = vmatprep.subr.mxu0 0.0
  %97 = vmatpush2.msra.mxu0 0.0
  %98 = vmatprep.mubr.f32.mxu0 0.0
  %99 = vmatmul.mubr.f32.gmra.mxu0 %v32
  %v100 = vpop.f32.mrf.mxu0
  %v101 = vadd.f32 %v29, %v100
  %v102 = vpop.f32.mrf.mxu0
  %103 = vdwg.mxu0
  %v104 = vmax.f32 %v101, 0.0
  %v105 = vld [vmem:[%s1 + $0x20] sm:$0xff]
  %v106 = vld [vmem:[%s1 + $0x28] sm:$0xff]
  %v107 = vld [vmem:[%s1 + $0x30] sm:$0xff]
  %v108 = vld [vmem:[%s1 + $0x38] sm:$0xff]
  %v109 = vld [vmem:[%s2 + $0x1] sm:$0x1]
  %v110 = vlaneseq
  %v111 = vshrl.u32 %v110, 7
  %v112 = vsub.s32 0, %v111
  %v113 = vrot.slane %v109, %v112
  %v115 = vsel %vm30, %v104, 0
  %117 = vmatprep.subr.mxu0 0.0
  %118 = vmatpush1.msra.mxu0 0.0
  %119 = vmatprep.subr.mxu0 0.0
  %120 = vmatpush1.msra.mxu0 0.0
  %121 = vmatprep.subr.mxu0 0.0
  %122 = vmatpush1.msra.mxu0 0.0
  %123 = vmatprep.subr.mxu0 0.0
  %124 = vmatpush1.msra.mxu0 0.0
  %125 = vmatprep.subr.mxu0 0.0
  %126 = vmatpush1.msra.mxu0 0.0
  %127 = vmatprep.subr.mxu0 0.0
  %128 = vmatpush1.msra.mxu0 0.0
  %129 = vmatprep.subr.mxu0 0.0
  %130 = vmatpush1.msra.mxu0 0.0
  %131 = vmatprep.subr.mxu0 0.0
  %132 = vmatpush1.msra.mxu0 0.0
  %133 = vmatprep.subr.mxu0 0.0
  %134 = vmatpush1.msra.mxu0 0.0
  %135 = vmatprep.subr.mxu0 0.0
  %136 = vmatpush1.msra.mxu0 0.0
  %137 = vmatprep.subr.mxu0 0.0
  %138 = vmatpush1.msra.mxu0 0.0
  %139 = vmatprep.subr.mxu0 0.0
  %140 = vmatpush1.msra.mxu0 0.0
  %141 = vmatprep.subr.mxu0 0.0
  %142 = vmatpush1.msra.mxu0 %v108
  %143 = vmatprep.subr.mxu0 0.0
  %144 = vmatpush1.msra.mxu0 %v107
  %145 = vmatprep.subr.mxu0 0.0
  %146 = vmatpush1.msra.mxu0 %v106
  %147 = vmatprep.subr.mxu0 0.0
  %148 = vmatpush1.msra.mxu0 %v105
  %149 = vmatprep.subr.mxu0 0.0
  %150 = vmatpush2.msra.mxu0 0.0
  %151 = vmatprep.subr.mxu0 0.0
  %152 = vmatpush2.msra.mxu0 0.0
  %153 = vmatprep.subr.mxu0 0.0
  %154 = vmatpush2.msra.mxu0 0.0
  %155 = vmatprep.subr.mxu0 0.0
  %156 = vmatpush2.msra.mxu0 0.0
  %157 = vmatprep.subr.mxu0 0.0
  %158 = vmatpush2.msra.mxu0 0.0
  %159 = vmatprep.subr.mxu0 0.0
  %160 = vmatpush2.msra.mxu0 0.0
  %161 = vmatprep.subr.mxu0 0.0
  %162 = vmatpush2.msra.mxu0 0.0
  %163 = vmatprep.subr.mxu0 0.0
  %164 = vmatpush2.msra.mxu0 0.0
  %165 = vmatprep.subr.mxu0 0.0
  %166 = vmatpush2.msra.mxu0 0.0
  %167 = vmatprep.subr.mxu0 0.0
  %168 = vmatpush2.msra.mxu0 0.0
  %169 = vmatprep.subr.mxu0 0.0
  %170 = vmatpush2.msra.mxu0 0.0
  %171 = vmatprep.subr.mxu0 0.0
  %172 = vmatpush2.msra.mxu0 0.0
  %173 = vmatprep.subr.mxu0 0.0
  %174 = vmatpush2.msra.mxu0 0.0
  %175 = vmatprep.subr.mxu0 0.0
  %176 = vmatpush2.msra.mxu0 0.0
  %177 = vmatprep.subr.mxu0 0.0
  %178 = vmatpush2.msra.mxu0 0.0
  %179 = vmatprep.subr.mxu0 0.0
  %180 = vmatpush2.msra.mxu0 0.0
  %181 = vmatprep.mubr.f32.mxu0 0.0
  %182 = vmatmul.mubr.f32.gmra.mxu0 %v115
  %v183 = vpop.f32.mrf.mxu0
  %v184 = vadd.f32 %v113, %v183
  %v185 = vpop.f32.mrf.mxu0
  %186 = vdwg.mxu0
  %v187 = vmax.f32 %v184, 0.0
  %v188 = vld [vmem:[%s1 + $0x40] sm:$0xff]
  %v189 = vld [vmem:[%s1 + $0x48] sm:$0xff]
  %v190 = vld [vmem:[%s1 + $0x50] sm:$0xff]
  %v191 = vld [vmem:[%s1 + $0x58] sm:$0xff]
  %v192 = vld [vmem:[%s2 + $0x2] sm:$0x1]
  %v193 = vlaneseq
  %v194 = vshrl.u32 %v193, 7
  %v195 = vsub.s32 0, %v194
  %v196 = vrot.slane %v192, %v195
  %v198 = vsel %vm30, %v187, 0
  %200 = vmatprep.subr.mxu0 0.0
  %201 = vmatpush1.msra.mxu0 0.0
  %202 = vmatprep.subr.mxu0 0.0
  %203 = vmatpush1.msra.mxu0 0.0
  %204 = vmatprep.subr.mxu0 0.0
  %205 = vmatpush1.msra.mxu0 0.0
  %206 = vmatprep.subr.mxu0 0.0
  %207 = vmatpush1.msra.mxu0 0.0
  %208 = vmatprep.subr.mxu0 0.0
  %209 = vmatpush1.msra.mxu0 0.0
  %210 = vmatprep.subr.mxu0 0.0
  %211 = vmatpush1.msra.mxu0 0.0
  %212 = vmatprep.subr.mxu0 0.0
  %213 = vmatpush1.msra.mxu0 0.0
  %214 = vmatprep.subr.mxu0 0.0
  %215 = vmatpush1.msra.mxu0 0.0
  %216 = vmatprep.subr.mxu0 0.0
  %217 = vmatpush1.msra.mxu0 0.0
  %218 = vmatprep.subr.mxu0 0.0
  %219 = vmatpush1.msra.mxu0 0.0
  %220 = vmatprep.subr.mxu0 0.0
  %221 = vmatpush1.msra.mxu0 0.0
  %222 = vmatprep.subr.mxu0 0.0
  %223 = vmatpush1.msra.mxu0 0.0
  %224 = vmatprep.subr.mxu0 0.0
  %225 = vmatpush1.msra.mxu0 %v191
  %226 = vmatprep.subr.mxu0 0.0
  %227 = vmatpush1.msra.mxu0 %v190
  %228 = vmatprep.subr.mxu0 0.0
  %229 = vmatpush1.msra.mxu0 %v189
  %230 = vmatprep.subr.mxu0 0.0
  %231 = vmatpush1.msra.mxu0 %v188
  %232 = vmatprep.subr.mxu0 0.0
  %233 = vmatpush2.msra.mxu0 0.0
  %234 = vmatprep.subr.mxu0 0.0
  %235 = vmatpush2.msra.mxu0 0.0
  %236 = vmatprep.subr.mxu0 0.0
  %237 = vmatpush2.msra.mxu0 0.0
  %238 = vmatprep.subr.mxu0 0.0
  %239 = vmatpush2.msra.mxu0 0.0
  %240 = vmatprep.subr.mxu0 0.0
  %241 = vmatpush2.msra.mxu0 0.0
  %242 = vmatprep.subr.mxu0 0.0
  %243 = vmatpush2.msra.mxu0 0.0
  %244 = vmatprep.subr.mxu0 0.0
  %245 = vmatpush2.msra.mxu0 0.0
  %246 = vmatprep.subr.mxu0 0.0
  %247 = vmatpush2.msra.mxu0 0.0
  %248 = vmatprep.subr.mxu0 0.0
  %249 = vmatpush2.msra.mxu0 0.0
  %250 = vmatprep.subr.mxu0 0.0
  %251 = vmatpush2.msra.mxu0 0.0
  %252 = vmatprep.subr.mxu0 0.0
  %253 = vmatpush2.msra.mxu0 0.0
  %254 = vmatprep.subr.mxu0 0.0
  %255 = vmatpush2.msra.mxu0 0.0
  %256 = vmatprep.subr.mxu0 0.0
  %257 = vmatpush2.msra.mxu0 0.0
  %258 = vmatprep.subr.mxu0 0.0
  %259 = vmatpush2.msra.mxu0 0.0
  %260 = vmatprep.subr.mxu0 0.0
  %261 = vmatpush2.msra.mxu0 0.0
  %262 = vmatprep.subr.mxu0 0.0
  %263 = vmatpush2.msra.mxu0 0.0
  %264 = vmatprep.mubr.f32.mxu0 0.0
  %265 = vmatmul.mubr.f32.gmra.mxu0 %v198
  %v266 = vpop.f32.mrf.mxu0
  %v267 = vadd.f32 %v196, %v266
  %v268 = vpop.f32.mrf.mxu0
  %269 = vdwg.mxu0
  %v270 = vmax.f32 %v267, 0.0
  %v271 = vld [vmem:[%s1 + $0x60] sm:$0xff]
  %v272 = vld [vmem:[%s1 + $0x68] sm:$0xff]
  %v273 = vld [vmem:[%s1 + $0x70] sm:$0xff]
  %v274 = vld [vmem:[%s1 + $0x78] sm:$0xff]
  %v275 = vld [vmem:[%s2 + $0x3] sm:$0x1]
  %v276 = vlaneseq
  %v277 = vshrl.u32 %v276, 7
  %v278 = vsub.s32 0, %v277
  %v279 = vrot.slane %v275, %v278
  %v281 = vsel %vm30, %v270, 0
  %283 = vmatprep.subr.mxu0 0.0
  %284 = vmatpush1.msra.mxu0 0.0
  %285 = vmatprep.subr.mxu0 0.0
  %286 = vmatpush1.msra.mxu0 0.0
  %287 = vmatprep.subr.mxu0 0.0
  %288 = vmatpush1.msra.mxu0 0.0
  %289 = vmatprep.subr.mxu0 0.0
  %290 = vmatpush1.msra.mxu0 0.0
  %291 = vmatprep.subr.mxu0 0.0
  %292 = vmatpush1.msra.mxu0 0.0
  %293 = vmatprep.subr.mxu0 0.0
  %294 = vmatpush1.msra.mxu0 0.0
  %295 = vmatprep.subr.mxu0 0.0
  %296 = vmatpush1.msra.mxu0 0.0
  %297 = vmatprep.subr.mxu0 0.0
  %298 = vmatpush1.msra.mxu0 0.0
  %299 = vmatprep.subr.mxu0 0.0
  %300 = vmatpush1.msra.mxu0 0.0
  %301 = vmatprep.subr.mxu0 0.0
  %302 = vmatpush1.msra.mxu0 0.0
  %303 = vmatprep.subr.mxu0 0.0
  %304 = vmatpush1.msra.mxu0 0.0
  %305 = vmatprep.subr.mxu0 0.0
  %306 = vmatpush1.msra.mxu0 0.0
  %307 = vmatprep.subr.mxu0 0.0
  %308 = vmatpush1.msra.mxu0 %v274
  %309 = vmatprep.subr.mxu0 0.0
  %310 = vmatpush1.msra.mxu0 %v273
  %311 = vmatprep.subr.mxu0 0.0
  %312 = vmatpush1.msra.mxu0 %v272
  %313 = vmatprep.subr.mxu0 0.0
  %314 = vmatpush1.msra.mxu0 %v271
  %315 = vmatprep.subr.mxu0 0.0
  %316 = vmatpush2.msra.mxu0 0.0
  %317 = vmatprep.subr.mxu0 0.0
  %318 = vmatpush2.msra.mxu0 0.0
  %319 = vmatprep.subr.mxu0 0.0
  %320 = vmatpush2.msra.mxu0 0.0
  %321 = vmatprep.subr.mxu0 0.0
  %322 = vmatpush2.msra.mxu0 0.0
  %323 = vmatprep.subr.mxu0 0.0
  %324 = vmatpush2.msra.mxu0 0.0
  %325 = vmatprep.subr.mxu0 0.0
  %326 = vmatpush2.msra.mxu0 0.0
  %327 = vmatprep.subr.mxu0 0.0
  %328 = vmatpush2.msra.mxu0 0.0
  %329 = vmatprep.subr.mxu0 0.0
  %330 = vmatpush2.msra.mxu0 0.0
  %331 = vmatprep.subr.mxu0 0.0
  %332 = vmatpush2.msra.mxu0 0.0
  %333 = vmatprep.subr.mxu0 0.0
  %334 = vmatpush2.msra.mxu0 0.0
  %335 = vmatprep.subr.mxu0 0.0
  %336 = vmatpush2.msra.mxu0 0.0
  %337 = vmatprep.subr.mxu0 0.0
  %338 = vmatpush2.msra.mxu0 0.0
  %339 = vmatprep.subr.mxu0 0.0
  %340 = vmatpush2.msra.mxu0 0.0
  %341 = vmatprep.subr.mxu0 0.0
  %342 = vmatpush2.msra.mxu0 0.0
  %343 = vmatprep.subr.mxu0 0.0
  %344 = vmatpush2.msra.mxu0 0.0
  %345 = vmatprep.subr.mxu0 0.0
  %346 = vmatpush2.msra.mxu0 0.0
  %347 = vmatprep.mubr.f32.mxu0 0.0
  %348 = vmatmul.mubr.f32.gmra.mxu0 %v281
  %v349 = vpop.f32.mrf.mxu0
  %v350 = vadd.f32 %v279, %v349
  %v351 = vpop.f32.mrf.mxu0
  %352 = vdwg.mxu0
  %v353 = vmax.f32 %v350, 0.0
  %v354 = vld [vmem:[%s1 + $0x80] sm:$0xff]
  %v355 = vld [vmem:[%s1 + $0x88] sm:$0xff]
  %v356 = vld [vmem:[%s1 + $0x90] sm:$0xff]
  %v357 = vld [vmem:[%s1 + $0x98] sm:$0xff]
  %v358 = vld [vmem:[%s2 + $0x4] sm:$0x1]
  %v359 = vlaneseq
  %v360 = vshrl.u32 %v359, 7
  %v361 = vsub.s32 0, %v360
  %v362 = vrot.slane %v358, %v361
  %v364 = vsel %vm30, %v353, 0
  %366 = vmatprep.subr.mxu0 0.0
  %367 = vmatpush1.msra.mxu0 0.0
  %368 = vmatprep.subr.mxu0 0.0
  %369 = vmatpush1.msra.mxu0 0.0
  %370 = vmatprep.subr.mxu0 0.0
  %371 = vmatpush1.msra.mxu0 0.0
  %372 = vmatprep.subr.mxu0 0.0
  %373 = vmatpush1.msra.mxu0 0.0
  %374 = vmatprep.subr.mxu0 0.0
  %375 = vmatpush1.msra.mxu0 0.0
  %376 = vmatprep.subr.mxu0 0.0
  %377 = vmatpush1.msra.mxu0 0.0
  %378 = vmatprep.subr.mxu0 0.0
  %379 = vmatpush1.msra.mxu0 0.0
  %380 = vmatprep.subr.mxu0 0.0
  %381 = vmatpush1.msra.mxu0 0.0
  %382 = vmatprep.subr.mxu0 0.0
  %383 = vmatpush1.msra.mxu0 0.0
  %384 = vmatprep.subr.mxu0 0.0
  %385 = vmatpush1.msra.mxu0 0.0
  %386 = vmatprep.subr.mxu0 0.0
  %387 = vmatpush1.msra.mxu0 0.0
  %388 = vmatprep.subr.mxu0 0.0
  %389 = vmatpush1.msra.mxu0 0.0
  %390 = vmatprep.subr.mxu0 0.0
  %391 = vmatpush1.msra.mxu0 %v357
  %392 = vmatprep.subr.mxu0 0.0
  %393 = vmatpush1.msra.mxu0 %v356
  %394 = vmatprep.subr.mxu0 0.0
  %395 = vmatpush1.msra.mxu0 %v355
  %396 = vmatprep.subr.mxu0 0.0
  %397 = vmatpush1.msra.mxu0 %v354
  %398 = vmatprep.subr.mxu0 0.0
  %399 = vmatpush2.msra.mxu0 0.0
  %400 = vmatprep.subr.mxu0 0.0
  %401 = vmatpush2.msra.mxu0 0.0
  %402 = vmatprep.subr.mxu0 0.0
  %403 = vmatpush2.msra.mxu0 0.0
  %404 = vmatprep.subr.mxu0 0.0
  %405 = vmatpush2.msra.mxu0 0.0
  %406 = vmatprep.subr.mxu0 0.0
  %407 = vmatpush2.msra.mxu0 0.0
  %408 = vmatprep.subr.mxu0 0.0
  %409 = vmatpush2.msra.mxu0 0.0
  %410 = vmatprep.subr.mxu0 0.0
  %411 = vmatpush2.msra.mxu0 0.0
  %412 = vmatprep.subr.mxu0 0.0
  %413 = vmatpush2.msra.mxu0 0.0
  %414 = vmatprep.subr.mxu0 0.0
  %415 = vmatpush2.msra.mxu0 0.0
  %416 = vmatprep.subr.mxu0 0.0
  %417 = vmatpush2.msra.mxu0 0.0
  %418 = vmatprep.subr.mxu0 0.0
  %419 = vmatpush2.msra.mxu0 0.0
  %420 = vmatprep.subr.mxu0 0.0
  %421 = vmatpush2.msra.mxu0 0.0
  %422 = vmatprep.subr.mxu0 0.0
  %423 = vmatpush2.msra.mxu0 0.0
  %424 = vmatprep.subr.mxu0 0.0
  %425 = vmatpush2.msra.mxu0 0.0
  %426 = vmatprep.subr.mxu0 0.0
  %427 = vmatpush2.msra.mxu0 0.0
  %428 = vmatprep.subr.mxu0 0.0
  %429 = vmatpush2.msra.mxu0 0.0
  %430 = vmatprep.mubr.f32.mxu0 0.0
  %431 = vmatmul.mubr.f32.gmra.mxu0 %v364
  %v432 = vpop.f32.mrf.mxu0
  %v433 = vadd.f32 %v362, %v432
  %v434 = vpop.f32.mrf.mxu0
  %435 = vdwg.mxu0
  %v436 = vmax.f32 %v433, 0.0
  %v437 = vld [vmem:[%s1 + $0xa0] sm:$0xff]
  %v438 = vld [vmem:[%s1 + $0xa8] sm:$0xff]
  %v439 = vld [vmem:[%s1 + $0xb0] sm:$0xff]
  %v440 = vld [vmem:[%s1 + $0xb8] sm:$0xff]
  %v441 = vld [vmem:[%s2 + $0x5] sm:$0x1]
  %v442 = vlaneseq
  %v443 = vshrl.u32 %v442, 7
  %v444 = vsub.s32 0, %v443
  %v445 = vrot.slane %v441, %v444
  %v447 = vsel %vm30, %v436, 0
  %449 = vmatprep.subr.mxu0 0.0
  %450 = vmatpush1.msra.mxu0 0.0
  %451 = vmatprep.subr.mxu0 0.0
  %452 = vmatpush1.msra.mxu0 0.0
  %453 = vmatprep.subr.mxu0 0.0
  %454 = vmatpush1.msra.mxu0 0.0
  %455 = vmatprep.subr.mxu0 0.0
  %456 = vmatpush1.msra.mxu0 0.0
  %457 = vmatprep.subr.mxu0 0.0
  %458 = vmatpush1.msra.mxu0 0.0
  %459 = vmatprep.subr.mxu0 0.0
  %460 = vmatpush1.msra.mxu0 0.0
  %461 = vmatprep.subr.mxu0 0.0
  %462 = vmatpush1.msra.mxu0 0.0
  %463 = vmatprep.subr.mxu0 0.0
  %464 = vmatpush1.msra.mxu0 0.0
  %465 = vmatprep.subr.mxu0 0.0
  %466 = vmatpush1.msra.mxu0 0.0
  %467 = vmatprep.subr.mxu0 0.0
  %468 = vmatpush1.msra.mxu0 0.0
  %469 = vmatprep.subr.mxu0 0.0
  %470 = vmatpush1.msra.mxu0 0.0
  %471 = vmatprep.subr.mxu0 0.0
  %472 = vmatpush1.msra.mxu0 0.0
  %473 = vmatprep.subr.mxu0 0.0
  %474 = vmatpush1.msra.mxu0 %v440
  %475 = vmatprep.subr.mxu0 0.0
  %476 = vmatpush1.msra.mxu0 %v439
  %477 = vmatprep.subr.mxu0 0.0
  %478 = vmatpush1.msra.mxu0 %v438
  %479 = vmatprep.subr.mxu0 0.0
  %480 = vmatpush1.msra.mxu0 %v437
  %481 = vmatprep.subr.mxu0 0.0
  %482 = vmatpush2.msra.mxu0 0.0
  %483 = vmatprep.subr.mxu0 0.0
  %484 = vmatpush2.msra.mxu0 0.0
  %485 = vmatprep.subr.mxu0 0.0
  %486 = vmatpush2.msra.mxu0 0.0
  %487 = vmatprep.subr.mxu0 0.0
  %488 = vmatpush2.msra.mxu0 0.0
  %489 = vmatprep.subr.mxu0 0.0
  %490 = vmatpush2.msra.mxu0 0.0
  %491 = vmatprep.subr.mxu0 0.0
  %492 = vmatpush2.msra.mxu0 0.0
  %493 = vmatprep.subr.mxu0 0.0
  %494 = vmatpush2.msra.mxu0 0.0
  %495 = vmatprep.subr.mxu0 0.0
  %496 = vmatpush2.msra.mxu0 0.0
  %497 = vmatprep.subr.mxu0 0.0
  %498 = vmatpush2.msra.mxu0 0.0
  %499 = vmatprep.subr.mxu0 0.0
  %500 = vmatpush2.msra.mxu0 0.0
  %501 = vmatprep.subr.mxu0 0.0
  %502 = vmatpush2.msra.mxu0 0.0
  %503 = vmatprep.subr.mxu0 0.0
  %504 = vmatpush2.msra.mxu0 0.0
  %505 = vmatprep.subr.mxu0 0.0
  %506 = vmatpush2.msra.mxu0 0.0
  %507 = vmatprep.subr.mxu0 0.0
  %508 = vmatpush2.msra.mxu0 0.0
  %509 = vmatprep.subr.mxu0 0.0
  %510 = vmatpush2.msra.mxu0 0.0
  %511 = vmatprep.subr.mxu0 0.0
  %512 = vmatpush2.msra.mxu0 0.0
  %513 = vmatprep.mubr.f32.mxu0 0.0
  %514 = vmatmul.mubr.f32.gmra.mxu0 %v447
  %v515 = vpop.f32.mrf.mxu0
  %v516 = vadd.f32 %v445, %v515
  %v517 = vpop.f32.mrf.mxu0
  %518 = vdwg.mxu0
  %v519 = vmax.f32 %v516, 0.0
  %v520 = vlaneseq
  %v521 = vshrl.u32 %v520, 7
  %v522 = vlaneseq
  %v523 = vand.u32 %v522, 127
  %v524 = vmul.u32 %v521, 2
  %vm525 = vcmp.ge.s32.totalorder %v523, %v524
  %v526 = vadd.s32 %v521, 1
  %v527 = vmul.u32 %v526, 2
  %vm528 = vcmp.lt.s32.totalorder %v523, %v527
  %vm529 = vmand %vm525, %vm528
  %v530 = vsel %vm529, 0.5, 0.0
  %vm531 = vcmask 31744
  %v533 = vsel %vm531, %v530, 0
  %vm535 = vcmask 1043456
  %v537 = vsel %vm535, %v519, 0
  %539 = vmatprep.subr.mxu0 0.0
  %540 = vmatpush1.msra.mxu0 0.0
  %541 = vmatprep.subr.mxu0 0.0
  %542 = vmatpush1.msra.mxu0 0.0
  %543 = vmatprep.subr.mxu0 0.0
  %544 = vmatpush1.msra.mxu0 0.0
  %545 = vmatprep.subr.mxu0 0.0
  %546 = vmatpush1.msra.mxu0 0.0
  %547 = vmatprep.subr.mxu0 0.0
  %548 = vmatpush1.msra.mxu0 0.0
  %549 = vmatprep.subr.mxu0 0.0
  %550 = vmatpush1.msra.mxu0 0.0
  %551 = vmatprep.subr.mxu0 0.0
  %552 = vmatpush1.msra.mxu0 0.0
  %553 = vmatprep.subr.mxu0 0.0
  %554 = vmatpush1.msra.mxu0 0.0
  %555 = vmatprep.subr.mxu0 0.0
  %556 = vmatpush1.msra.mxu0 0.0
  %557 = vmatprep.subr.mxu0 0.0
  %558 = vmatpush1.msra.mxu0 0.0
  %559 = vmatprep.subr.mxu0 0.0
  %560 = vmatpush1.msra.mxu0 0.0
  %561 = vmatprep.subr.mxu0 0.0
  %562 = vmatpush1.msra.mxu0 0.0
  %563 = vmatprep.subr.mxu0 0.0
  %564 = vmatpush1.msra.mxu0 0.0
  %565 = vmatprep.subr.mxu0 0.0
  %566 = vmatpush1.msra.mxu0 0.0
  %567 = vmatprep.subr.mxu0 0.0
  %568 = vmatpush1.msra.mxu0 0.0
  %569 = vmatprep.subr.mxu0 0.0
  %570 = vmatpush1.msra.mxu0 %v537
  %571 = vmatprep.subr.mxu0 0.0
  %572 = vmatpush2.msra.mxu0 0.0
  %573 = vmatprep.subr.mxu0 0.0
  %574 = vmatpush2.msra.mxu0 0.0
  %575 = vmatprep.subr.mxu0 0.0
  %576 = vmatpush2.msra.mxu0 0.0
  %577 = vmatprep.subr.mxu0 0.0
  %578 = vmatpush2.msra.mxu0 0.0
  %579 = vmatprep.subr.mxu0 0.0
  %580 = vmatpush2.msra.mxu0 0.0
  %581 = vmatprep.subr.mxu0 0.0
  %582 = vmatpush2.msra.mxu0 0.0
  %583 = vmatprep.subr.mxu0 0.0
  %584 = vmatpush2.msra.mxu0 0.0
  %585 = vmatprep.subr.mxu0 0.0
  %586 = vmatpush2.msra.mxu0 0.0
  %587 = vmatprep.subr.mxu0 0.0
  %588 = vmatpush2.msra.mxu0 0.0
  %589 = vmatprep.subr.mxu0 0.0
  %590 = vmatpush2.msra.mxu0 0.0
  %591 = vmatprep.subr.mxu0 0.0
  %592 = vmatpush2.msra.mxu0 0.0
  %593 = vmatprep.subr.mxu0 0.0
  %594 = vmatpush2.msra.mxu0 0.0
  %595 = vmatprep.subr.mxu0 0.0
  %596 = vmatpush2.msra.mxu0 0.0
  %597 = vmatprep.subr.mxu0 0.0
  %598 = vmatpush2.msra.mxu0 0.0
  %599 = vmatprep.subr.mxu0 0.0
  %600 = vmatpush2.msra.mxu0 0.0
  %601 = vmatprep.subr.mxu0 0.0
  %602 = vmatpush2.msra.mxu0 0.0
  %603 = vmatprep.mubr.f32.mxu0 0.0
  %604 = vmatmul.mubr.f32.gmra.mxu0 %v533
  %v605 = vpop.f32.mrf.mxu0
  %v606 = vadd.f32 0.0, %v605
  %v607 = vpop.f32.mrf.mxu0
  %608 = vdwg.mxu0
  %v609 = vld [vmem:[%s3] sm:$0xff]
  %v610 = vld [vmem:[%s3 + $0x8] sm:$0xff]
  %v611 = vld [vmem:[%s3 + $0x10] sm:$0xff]
  %v612 = vld [vmem:[%s3 + $0x18] sm:$0xff]
  %v613 = vld [vmem:[%s4] sm:$0x1]
  %v615 = vlaneseq
  %v616 = vshrl.u32 %v615, 7
  %v617 = vsub.s32 0, %v616
  %v618 = vrot.slane %v613, %v617
  %v621 = vsel %vm30, %v606, 0
  %623 = vmatprep.subr.mxu0 0.0
  %624 = vmatpush1.msra.mxu0 0.0
  %625 = vmatprep.subr.mxu0 0.0
  %626 = vmatpush1.msra.mxu0 0.0
  %627 = vmatprep.subr.mxu0 0.0
  %628 = vmatpush1.msra.mxu0 0.0
  %629 = vmatprep.subr.mxu0 0.0
  %630 = vmatpush1.msra.mxu0 0.0
  %631 = vmatprep.subr.mxu0 0.0
  %632 = vmatpush1.msra.mxu0 0.0
  %633 = vmatprep.subr.mxu0 0.0
  %634 = vmatpush1.msra.mxu0 0.0
  %635 = vmatprep.subr.mxu0 0.0
  %636 = vmatpush1.msra.mxu0 0.0
  %637 = vmatprep.subr.mxu0 0.0
  %638 = vmatpush1.msra.mxu0 0.0
  %639 = vmatprep.subr.mxu0 0.0
  %640 = vmatpush1.msra.mxu0 0.0
  %641 = vmatprep.subr.mxu0 0.0
  %642 = vmatpush1.msra.mxu0 0.0
  %643 = vmatprep.subr.mxu0 0.0
  %644 = vmatpush1.msra.mxu0 0.0
  %645 = vmatprep.subr.mxu0 0.0
  %646 = vmatpush1.msra.mxu0 0.0
  %647 = vmatprep.subr.mxu0 0.0
  %648 = vmatpush1.msra.mxu0 %v612
  %649 = vmatprep.subr.mxu0 0.0
  %650 = vmatpush1.msra.mxu0 %v611
  %651 = vmatprep.subr.mxu0 0.0
  %652 = vmatpush1.msra.mxu0 %v610
  %653 = vmatprep.subr.mxu0 0.0
  %654 = vmatpush1.msra.mxu0 %v609
  %655 = vmatprep.subr.mxu0 0.0
  %656 = vmatpush2.msra.mxu0 0.0
  %657 = vmatprep.subr.mxu0 0.0
  %658 = vmatpush2.msra.mxu0 0.0
  %659 = vmatprep.subr.mxu0 0.0
  %660 = vmatpush2.msra.mxu0 0.0
  %661 = vmatprep.subr.mxu0 0.0
  %662 = vmatpush2.msra.mxu0 0.0
  %663 = vmatprep.subr.mxu0 0.0
  %664 = vmatpush2.msra.mxu0 0.0
  %665 = vmatprep.subr.mxu0 0.0
  %666 = vmatpush2.msra.mxu0 0.0
  %667 = vmatprep.subr.mxu0 0.0
  %668 = vmatpush2.msra.mxu0 0.0
  %669 = vmatprep.subr.mxu0 0.0
  %670 = vmatpush2.msra.mxu0 0.0
  %671 = vmatprep.subr.mxu0 0.0
  %672 = vmatpush2.msra.mxu0 0.0
  %673 = vmatprep.subr.mxu0 0.0
  %674 = vmatpush2.msra.mxu0 0.0
  %675 = vmatprep.subr.mxu0 0.0
  %676 = vmatpush2.msra.mxu0 0.0
  %677 = vmatprep.subr.mxu0 0.0
  %678 = vmatpush2.msra.mxu0 0.0
  %679 = vmatprep.subr.mxu0 0.0
  %680 = vmatpush2.msra.mxu0 0.0
  %681 = vmatprep.subr.mxu0 0.0
  %682 = vmatpush2.msra.mxu0 0.0
  %683 = vmatprep.subr.mxu0 0.0
  %684 = vmatpush2.msra.mxu0 0.0
  %685 = vmatprep.subr.mxu0 0.0
  %686 = vmatpush2.msra.mxu0 0.0
  %687 = vmatprep.mubr.f32.mxu0 0.0
  %688 = vmatmul.mubr.f32.gmra.mxu0 %v621
  %v689 = vpop.f32.mrf.mxu0
  %v690 = vadd.f32 %v618, %v689
  %v691 = vpop.f32.mrf.mxu0
  %692 = vdwg.mxu0
  %693 = vst [vmem:[%s5] sm:$0xff] %v690
  // Predicated region
  $region22: #{titans_decoder_forward.1} parent=0 // pred_check
    _
  $region23: #{titans_decoder_forward.1} parent=0 // pred_check_branch
    %695 = sbr.rel (0) target = $region25
  $region24: #{titans_decoder_forward.1} parent=0 // pred_region
    _
  $region25: #{titans_decoder_forward.1} parent=0 // pred_fallthru
    _
  // Predicated region
  $region26: #{titans_decoder_forward.1} parent=0 // pred_check
    _
  $region27: #{titans_decoder_forward.1} parent=0 // pred_check_branch
    %697 = sbr.rel (0) target = $region29
  $region28: #{titans_decoder_forward.1} parent=0 // pred_region
    _
  $region29: #{titans_decoder_forward.1} parent=0 // pred_fallthru
    _

</llo_original>
